<compile_context>
chip_gen: v5e
topology: v5e:2x2
jax: 0.10.0
libtpu: 0.0.40
codegen_flags: <defaults>
</compile_context>

<pallas_src>
import jax
import jax.numpy as jnp
from jax.experimental import pallas as pl
from jax.experimental.pallas import tpu as pltpu

LANE = 128
SUBLANE = 8


def _round_up(n, m):
    return ((n + m - 1) // m) * m


def _vae_kernel(x_ref, eps_ref,
                w1_ref, b1_ref,
                wml_ref, bml_ref,      # fused [hidden_pad, 2*latent_pad] = [wmu | wlv]
                w3_ref, b3_ref,
                w4_ref, b4_ref,
                recon_ref, mulv_ref):
    # encode: h1 = relu(x @ W1 + b1)   (bf16 MXU operands, f32 accumulate)
    h1 = jnp.dot(x_ref[...], w1_ref[...],
                 preferred_element_type=jnp.float32) + b1_ref[...]
    h1 = jnp.maximum(h1, 0.0).astype(jnp.bfloat16)        # bf16 intermediate: half the spill bytes

    # fused mu|logvar projection: one MXU pass instead of two tiny ones
    mulv = jnp.dot(h1, wml_ref[...],
                   preferred_element_type=jnp.float32) + bml_ref[...]   # (TB, 2*l_pad) f32
    l_pad = mulv.shape[-1] // 2
    mu = mulv[:, :l_pad]
    logvar = mulv[:, l_pad:]

    # reparameterize (f32 elementwise): z = mu + eps * exp(0.5 * logvar)
    z = mu + eps_ref[...] * jnp.exp(0.5 * logvar)

    # decode: recon = sigmoid(relu(z @ W3 + b3) @ W4 + b4)
    h3 = jnp.dot(z.astype(jnp.bfloat16), w3_ref[...],
                 preferred_element_type=jnp.float32) + b3_ref[...]
    h3 = jnp.maximum(h3, 0.0).astype(jnp.bfloat16)
    logits = jnp.dot(h3, w4_ref[...],
                     preferred_element_type=jnp.float32) + b4_ref[...]
    # exact sigmoid with a single EUP op: sigmoid(x) = 0.5 * (tanh(0.5 x) + 1)
    recon = 0.5 * (jnp.tanh(0.5 * logits) + 1.0)

    recon_ref[...] = recon.astype(recon_ref.dtype)          # bf16 lane-dense store
    mulv_ref[...] = mulv.astype(mulv_ref.dtype)


def init_params(key, input_dim, latent_dim, hidden_dim):
    """Logical (unpadded) parameters matching nn.Linear shapes, pre-transposed to [in, out]."""
    ks = jax.random.split(key, 10)

    def lin(kw, kb, fan_in, fan_out):
        bound = 1.0 / jnp.sqrt(fan_in)
        w = jax.random.uniform(kw, (fan_in, fan_out), jnp.float32, -bound, bound)
        b = jax.random.uniform(kb, (1, fan_out), jnp.float32, -bound, bound)
        return w, b

    w1, b1 = lin(ks[0], ks[1], input_dim, hidden_dim)      # fc1
    wmu, bmu = lin(ks[2], ks[3], hidden_dim, latent_dim)   # fc2_mu
    wlv, blv = lin(ks[4], ks[5], hidden_dim, latent_dim)   # fc2_logvar
    w3, b3 = lin(ks[6], ks[7], latent_dim, hidden_dim)     # fc3
    w4, b4 = lin(ks[8], ks[9], hidden_dim, input_dim)      # fc4
    return dict(w1=w1, b1=b1, wmu=wmu, bmu=bmu, wlv=wlv, blv=blv,
                w3=w3, b3=b3, w4=w4, b4=b4)


def pack_params(params, input_dim, latent_dim, hidden_dim):
    """Zero-pad every feature dim to the 128-lane width, fuse wmu|wlv, cast weights to bf16."""
    in_pad = _round_up(input_dim, LANE)
    h_pad = _round_up(hidden_dim, LANE)
    l_pad = _round_up(latent_dim, LANE)

    def pad_w(w, r, c):
        return jnp.pad(w, ((0, r - w.shape[0]), (0, c - w.shape[1])))

    def pad_b(b, c):
        return jnp.pad(b, ((0, 0), (0, c - b.shape[1])))

    wml = jnp.concatenate([pad_w(params["wmu"], h_pad, l_pad),
                           pad_w(params["wlv"], h_pad, l_pad)], axis=1)
    bml = jnp.concatenate([pad_b(params["bmu"], l_pad),
                           pad_b(params["blv"], l_pad)], axis=1)

    packed = dict(
        w1=pad_w(params["w1"], in_pad, h_pad).astype(jnp.bfloat16),
        b1=pad_b(params["b1"], h_pad).astype(jnp.float32),
        wml=wml.astype(jnp.bfloat16),
        bml=bml.astype(jnp.float32),
        w3=pad_w(params["w3"], l_pad, h_pad).astype(jnp.bfloat16),
        b3=pad_b(params["b3"], h_pad).astype(jnp.float32),
        w4=pad_w(params["w4"], h_pad, in_pad).astype(jnp.bfloat16),
        b4=pad_b(params["b4"], in_pad).astype(jnp.float32),
    )
    dims = dict(input_dim=input_dim, latent_dim=latent_dim, hidden_dim=hidden_dim,
                in_pad=in_pad, h_pad=h_pad, l_pad=l_pad)
    return packed, dims


def pad_activations(x, eps, dims):
    """Pad feature dims to lane width and cast ONCE (outside the hot loop): x->bf16, eps->f32."""
    in_pad, l_pad = dims["in_pad"], dims["l_pad"]
    x_p = jnp.pad(x, ((0, 0), (0, in_pad - x.shape[1]))).astype(jnp.bfloat16)
    eps_p = jnp.pad(eps, ((0, 0), (0, l_pad - eps.shape[1]))).astype(jnp.float32)
    return x_p, eps_p


def vae_forward(x_p, eps_p, packed, dims, *, batch_tile=512):
    """Batch-tiled Pallas VAE forward on pre-padded activations. Returns (recon, mu, logvar) unpadded."""
    B = x_p.shape[0]
    input_dim, latent_dim = dims["input_dim"], dims["latent_dim"]
    in_pad, h_pad, l_pad = dims["in_pad"], dims["h_pad"], dims["l_pad"]
    assert x_p.shape == (B, in_pad) and x_p.dtype == jnp.bfloat16
    assert eps_p.shape == (B, l_pad) and eps_p.dtype == jnp.float32

    # Batch tile: multiple of 8 sublanes; default 512 rows (past the ~85% HBM-roofline knee).
    tb = _round_up(min(batch_tile, B), SUBLANE)
    # Big batch that fits a single tile -> split into 2 steps so both v7x TensorCores get work.
    if B >= 512 and _round_up(B, tb) == tb:
        tb = _round_up(pl.cdiv(B, 2), SUBLANE)
    b_pad = _round_up(B, tb)
    if b_pad != B:  # batch padding only when actually needed (no per-call copy otherwise)
        x_p = jnp.pad(x_p, ((0, b_pad - B), (0, 0)))
        eps_p = jnp.pad(eps_p, ((0, b_pad - B), (0, 0)))

    grid = (b_pad // tb,)

    def batch_map(i):
        return (i, 0)

    def const_map(i):          # weights/biases stay VMEM-resident across grid steps
        return (0, 0)

    in_specs = [
        pl.BlockSpec((tb, in_pad), batch_map),                                          # x (bf16)
        pl.BlockSpec((tb, l_pad), batch_map),                                           # eps (f32)
        pl.BlockSpec((in_pad, h_pad), const_map, pipeline_mode=pl.Buffered(1)),         # w1
        pl.BlockSpec((1, h_pad), const_map, pipeline_mode=pl.Buffered(1)),              # b1
        pl.BlockSpec((h_pad, 2 * l_pad), const_map, pipeline_mode=pl.Buffered(1)),      # wml
        pl.BlockSpec((1, 2 * l_pad), const_map, pipeline_mode=pl.Buffered(1)),          # bml
        pl.BlockSpec((l_pad, h_pad), const_map, pipeline_mode=pl.Buffered(1)),          # w3
        pl.BlockSpec((1, h_pad), const_map, pipeline_mode=pl.Buffered(1)),              # b3
        pl.BlockSpec((h_pad, in_pad), const_map, pipeline_mode=pl.Buffered(1)),         # w4
        pl.BlockSpec((1, in_pad), const_map, pipeline_mode=pl.Buffered(1)),             # b4
    ]
    out_specs = (
        pl.BlockSpec((tb, in_pad), batch_map),          # recon (bf16, lane-dense, padded)
        pl.BlockSpec((tb, 2 * l_pad), batch_map),       # packed [mu | logvar] (f32)
    )
    out_shape = (
        jax.ShapeDtypeStruct((b_pad, in_pad), jnp.bfloat16),
        jax.ShapeDtypeStruct((b_pad, 2 * l_pad), jnp.float32),
    )

    args = (x_p, eps_p,
            packed["w1"], packed["b1"],
            packed["wml"], packed["bml"],
            packed["w3"], packed["b3"],
            packed["w4"], packed["b4"])

    # VMEM budget: double-buffered activation tiles + single-buffered weights + intermediates.
    act_bytes = 2 * (tb * in_pad * 2 + tb * l_pad * 4)               # x, eps (x2 buffers)
    out_bytes = 2 * (tb * in_pad * 2 + tb * 2 * l_pad * 4)           # recon, mulv (x2 buffers)
    w_bytes = sum(int(packed[k].size) * packed[k].dtype.itemsize
                  for k in ("w1", "b1", "wml", "bml", "w3", "b3", "w4", "b4"))
    interm_bytes = tb * (2 * h_pad * 2 + h_pad * 4 + 2 * l_pad * 4 + in_pad * 4)
    vmem_limit = int(1.5 * (act_bytes + out_bytes + w_bytes + interm_bytes)) + (4 << 20)
    vmem_limit = min(max(vmem_limit, 32 << 20), 64 << 20)            # cap at v7x physical VMEM

    flops = 2 * b_pad * (in_pad * h_pad + h_pad * 2 * l_pad + l_pad * h_pad + h_pad * in_pad)
    transcendentals = b_pad * (l_pad + in_pad)                        # exp in reparam + tanh in sigmoid
    bytes_accessed = (sum(int(a.size) * a.dtype.itemsize for a in args)
                      + b_pad * in_pad * 2 + b_pad * 2 * l_pad * 4)

    recon_p, mulv_p = pl.pallas_call(
        _vae_kernel,
        out_shape=out_shape,
        grid=grid,
        in_specs=in_specs,
        out_specs=out_specs,
        compiler_params=pltpu.CompilerParams(
            dimension_semantics=("parallel",),            # shard batch tiles across v7x TCs
            vmem_limit_bytes=vmem_limit),
        cost_estimate=pl.CostEstimate(flops=flops,
                                      transcendentals=transcendentals,
                                      bytes_accessed=bytes_accessed),
    )(*args)

    recon = recon_p[:B, :input_dim].astype(jnp.float32)
    mu = mulv_p[:B, :latent_dim]
    logvar = mulv_p[:B, l_pad:l_pad + latent_dim]
    return recon, mu, logvar


if __name__ == "__main__":
    batch = 8
    input_dim = 16
    latent_dim = 4
    hidden_dim = 32

    key = jax.random.PRNGKey(0)
    k_x, k_eps, k_params = jax.random.split(key, 3)

    x = jax.random.normal(k_x, (batch, input_dim), dtype=jnp.float32)
    # TODO(synk): torch.randn_like is drawn inside reparameterize; here eps is sampled
    # deterministically in the wrapper and passed in (in-kernel pltpu PRNG is optional).
    eps = jax.random.normal(k_eps, (batch, latent_dim), dtype=jnp.float32)

    params = init_params(k_params, input_dim, latent_dim, hidden_dim)
    packed, dims = pack_params(params, input_dim, latent_dim, hidden_dim)
    x_p, eps_p = pad_activations(x, eps, dims)     # pad/cast once, outside the hot path

    recon, mu, logvar = vae_forward(x_p, eps_p, packed, dims)
    jax.block_until_ready((recon, mu, logvar))

    # Reference emulating kernel numerics (bf16 inputs / matmul operands, f32 accumulate).
    def bdot(a, w):
        return jnp.dot(a.astype(jnp.bfloat16), w.astype(jnp.bfloat16),
                       preferred_element_type=jnp.float32)

    x_b = x.astype(jnp.bfloat16).astype(jnp.float32)
    h1 = jnp.maximum(bdot(x_b, params["w1"]) + params["b1"], 0.0)
    mu_ref = bdot(h1, params["wmu"]) + params["bmu"]
    lv_ref = bdot(h1, params["wlv"]) + params["blv"]
    z_ref = mu_ref + eps * jnp.exp(0.5 * lv_ref)
    h3 = jnp.maximum(bdot(z_ref, params["w3"]) + params["b3"], 0.0)
    recon_ref = jax.nn.sigmoid(bdot(h3, params["w4"]) + params["b4"])

    assert jnp.allclose(mu, mu_ref, atol=2e-3, rtol=2e-3)
    assert jnp.allclose(logvar, lv_ref, atol=2e-3, rtol=2e-3)
    assert jnp.allclose(recon, recon_ref, atol=5e-3)   # recon streamed back as bf16

    print("KERNEL_OK")
</pallas_src>

<mosaic_0001>
module attributes {stable_mosaic.version = 11 : i64} {
  func.func @_vae_kernel(%arg0: i32, %arg1: memref<8x128xbf16, #tpu.memory_space<vmem>>, %arg2: memref<8x128xf32, #tpu.memory_space<vmem>>, %arg3: memref<128x128xbf16, #tpu.memory_space<vmem>>, %arg4: memref<1x128xf32, #tpu.memory_space<vmem>>, %arg5: memref<128x256xbf16, #tpu.memory_space<vmem>>, %arg6: memref<1x256xf32, #tpu.memory_space<vmem>>, %arg7: memref<128x128xbf16, #tpu.memory_space<vmem>>, %arg8: memref<1x128xf32, #tpu.memory_space<vmem>>, %arg9: memref<128x128xbf16, #tpu.memory_space<vmem>>, %arg10: memref<1x128xf32, #tpu.memory_space<vmem>>, %arg11: memref<8x128xbf16, #tpu.memory_space<vmem>>, %arg12: memref<8x256xf32, #tpu.memory_space<vmem>>) attributes {dimension_semantics = [#tpu.dimension_semantics<parallel>], iteration_bounds = array<i64: 1>, scalar_prefetch = 0 : i64, scratch_operands = 0 : i64, tpu.core_type = #tpu.core_type<tc>, window_params = [{transform_indices = @transform_0, window_bounds = array<i64: 8, 128>}, {transform_indices = @transform_1, window_bounds = array<i64: 8, 128>}, {pipeline_mode = #tpu.pipeline_mode<synchronous>, transform_indices = @transform_2, window_bounds = array<i64: 128, 128>}, {pipeline_mode = #tpu.pipeline_mode<synchronous>, transform_indices = @transform_3, window_bounds = array<i64: 1, 128>}, {pipeline_mode = #tpu.pipeline_mode<synchronous>, transform_indices = @transform_4, window_bounds = array<i64: 128, 256>}, {pipeline_mode = #tpu.pipeline_mode<synchronous>, transform_indices = @transform_5, window_bounds = array<i64: 1, 256>}, {pipeline_mode = #tpu.pipeline_mode<synchronous>, transform_indices = @transform_6, window_bounds = array<i64: 128, 128>}, {pipeline_mode = #tpu.pipeline_mode<synchronous>, transform_indices = @transform_7, window_bounds = array<i64: 1, 128>}, {pipeline_mode = #tpu.pipeline_mode<synchronous>, transform_indices = @transform_8, window_bounds = array<i64: 128, 128>}, {pipeline_mode = #tpu.pipeline_mode<synchronous>, transform_indices = @transform_9, window_bounds = array<i64: 1, 128>}, {transform_indices = @transform_10, window_bounds = array<i64: 8, 128>}, {transform_indices = @transform_11, window_bounds = array<i64: 8, 256>}]} {
    %c0 = arith.constant 0 : index
    %c0_0 = arith.constant 0 : index
    %0 = vector.load %arg1[%c0, %c0_0] : memref<8x128xbf16, #tpu.memory_space<vmem>>, vector<8x128xbf16>
    %c0_1 = arith.constant 0 : index
    %c0_2 = arith.constant 0 : index
    %1 = vector.load %arg3[%c0_1, %c0_2] : memref<128x128xbf16, #tpu.memory_space<vmem>>, vector<128x128xbf16>
    %cst = arith.constant dense<0.000000e+00> : vector<8x128xf32>
    %2 = tpu.matmul %0, %1, %cst {dimension_numbers = #tpu.dot_dimension_numbers<[1], [0], [0], [1], [0, 0, 1, 1], [], []>} : vector<8x128xbf16>, vector<128x128xbf16>, vector<8x128xf32> -> vector<8x128xf32>
    %c0_3 = arith.constant 0 : index
    %c0_4 = arith.constant 0 : index
    %3 = vector.load %arg4[%c0_3, %c0_4] : memref<1x128xf32, #tpu.memory_space<vmem>>, vector<1x128xf32>
    %4 = vector.broadcast %3 : vector<1x128xf32> to vector<8x128xf32>
    %5 = arith.addf %2, %4 : vector<8x128xf32>
    %cst_5 = arith.constant 0.000000e+00 : f32
    %6 = vector.broadcast %cst_5 : f32 to vector<8x128xf32>
    %7 = arith.maximumf %5, %6 : vector<8x128xf32>
    %8 = arith.truncf %7 : vector<8x128xf32> to vector<8x128xbf16>
    %c0_6 = arith.constant 0 : index
    %c0_7 = arith.constant 0 : index
    %9 = vector.load %arg5[%c0_6, %c0_7] : memref<128x256xbf16, #tpu.memory_space<vmem>>, vector<128x256xbf16>
    %cst_8 = arith.constant dense<0.000000e+00> : vector<8x256xf32>
    %10 = tpu.matmul %8, %9, %cst_8 {dimension_numbers = #tpu.dot_dimension_numbers<[1], [0], [0], [1], [0, 0, 1, 1], [], []>} : vector<8x128xbf16>, vector<128x256xbf16>, vector<8x256xf32> -> vector<8x256xf32>
    %c0_9 = arith.constant 0 : index
    %c0_10 = arith.constant 0 : index
    %11 = vector.load %arg6[%c0_9, %c0_10] : memref<1x256xf32, #tpu.memory_space<vmem>>, vector<1x256xf32>
    %12 = vector.broadcast %11 : vector<1x256xf32> to vector<8x256xf32>
    %13 = arith.addf %10, %12 : vector<8x256xf32>
    %14 = vector.extract_strided_slice %13 {offsets = [0, 0], sizes = [8, 128], strides = [1, 1]} : vector<8x256xf32> to vector<8x128xf32>
    %15 = vector.extract_strided_slice %13 {offsets = [0, 128], sizes = [8, 128], strides = [1, 1]} : vector<8x256xf32> to vector<8x128xf32>
    %c0_11 = arith.constant 0 : index
    %c0_12 = arith.constant 0 : index
    %16 = vector.load %arg2[%c0_11, %c0_12] : memref<8x128xf32, #tpu.memory_space<vmem>>, vector<8x128xf32>
    %cst_13 = arith.constant 5.000000e-01 : f32
    %17 = vector.broadcast %cst_13 : f32 to vector<8x128xf32>
    %18 = arith.mulf %17, %15 : vector<8x128xf32>
    %19 = math.exp %18 : vector<8x128xf32>
    %20 = arith.mulf %16, %19 : vector<8x128xf32>
    %21 = arith.addf %14, %20 : vector<8x128xf32>
    %22 = arith.truncf %21 : vector<8x128xf32> to vector<8x128xbf16>
    %c0_14 = arith.constant 0 : index
    %c0_15 = arith.constant 0 : index
    %23 = vector.load %arg7[%c0_14, %c0_15] : memref<128x128xbf16, #tpu.memory_space<vmem>>, vector<128x128xbf16>
    %cst_16 = arith.constant dense<0.000000e+00> : vector<8x128xf32>
    %24 = tpu.matmul %22, %23, %cst_16 {dimension_numbers = #tpu.dot_dimension_numbers<[1], [0], [0], [1], [0, 0, 1, 1], [], []>} : vector<8x128xbf16>, vector<128x128xbf16>, vector<8x128xf32> -> vector<8x128xf32>
    %c0_17 = arith.constant 0 : index
    %c0_18 = arith.constant 0 : index
    %25 = vector.load %arg8[%c0_17, %c0_18] : memref<1x128xf32, #tpu.memory_space<vmem>>, vector<1x128xf32>
    %26 = vector.broadcast %25 : vector<1x128xf32> to vector<8x128xf32>
    %27 = arith.addf %24, %26 : vector<8x128xf32>
    %cst_19 = arith.constant 0.000000e+00 : f32
    %28 = vector.broadcast %cst_19 : f32 to vector<8x128xf32>
    %29 = arith.maximumf %27, %28 : vector<8x128xf32>
    %30 = arith.truncf %29 : vector<8x128xf32> to vector<8x128xbf16>
    %c0_20 = arith.constant 0 : index
    %c0_21 = arith.constant 0 : index
    %31 = vector.load %arg9[%c0_20, %c0_21] : memref<128x128xbf16, #tpu.memory_space<vmem>>, vector<128x128xbf16>
    %cst_22 = arith.constant dense<0.000000e+00> : vector<8x128xf32>
    %32 = tpu.matmul %30, %31, %cst_22 {dimension_numbers = #tpu.dot_dimension_numbers<[1], [0], [0], [1], [0, 0, 1, 1], [], []>} : vector<8x128xbf16>, vector<128x128xbf16>, vector<8x128xf32> -> vector<8x128xf32>
    %c0_23 = arith.constant 0 : index
    %c0_24 = arith.constant 0 : index
    %33 = vector.load %arg10[%c0_23, %c0_24] : memref<1x128xf32, #tpu.memory_space<vmem>>, vector<1x128xf32>
    %34 = vector.broadcast %33 : vector<1x128xf32> to vector<8x128xf32>
    %35 = arith.addf %32, %34 : vector<8x128xf32>
    %cst_25 = arith.constant 5.000000e-01 : f32
    %36 = vector.broadcast %cst_25 : f32 to vector<8x128xf32>
    %37 = arith.mulf %36, %35 : vector<8x128xf32>
    %38 = math.tanh %37 : vector<8x128xf32>
    %cst_26 = arith.constant 1.000000e+00 : f32
    %39 = vector.broadcast %cst_26 : f32 to vector<8x128xf32>
    %40 = arith.addf %38, %39 : vector<8x128xf32>
    %cst_27 = arith.constant 5.000000e-01 : f32
    %41 = vector.broadcast %cst_27 : f32 to vector<8x128xf32>
    %42 = arith.mulf %41, %40 : vector<8x128xf32>
    %43 = arith.truncf %42 : vector<8x128xf32> to vector<8x128xbf16>
    %c0_28 = arith.constant 0 : index
    %c0_29 = arith.constant 0 : index
    %44 = vector.load %arg11[%c0_28, %c0_29] : memref<8x128xbf16, #tpu.memory_space<vmem>>, vector<8x128xbf16>
    tpu.vector_store %arg11[%c0_28, %c0_29], %43 {strides = array<i32>} : memref<8x128xbf16, #tpu.memory_space<vmem>>, vector<8x128xbf16>,
    %c0_30 = arith.constant 0 : index
    %c0_31 = arith.constant 0 : index
    %45 = vector.load %arg12[%c0_30, %c0_31] : memref<8x256xf32, #tpu.memory_space<vmem>>, vector<8x256xf32>
    tpu.vector_store %arg12[%c0_30, %c0_31], %13 {strides = array<i32>} : memref<8x256xf32, #tpu.memory_space<vmem>>, vector<8x256xf32>,
    return
  }
  func.func @transform_0(%arg0: i32) -> (i32, i32) {
    %c0_i32 = arith.constant 0 : i32
    %c0_i32_0 = arith.constant 0 : i32
    return %arg0, %c0_i32 : i32, i32
  }
  func.func @transform_1(%arg0: i32) -> (i32, i32) {
    %c0_i32 = arith.constant 0 : i32
    %c0_i32_0 = arith.constant 0 : i32
    return %arg0, %c0_i32 : i32, i32
  }
  func.func @transform_2(%arg0: i32) -> (i32, i32) {
    %c0_i32 = arith.constant 0 : i32
    %c0_i32_0 = arith.constant 0 : i32
    %c0_i32_1 = arith.constant 0 : i32
    return %c0_i32, %c0_i32_0 : i32, i32
  }
  func.func @transform_3(%arg0: i32) -> (i32, i32) {
    %c0_i32 = arith.constant 0 : i32
    %c0_i32_0 = arith.constant 0 : i32
    %c0_i32_1 = arith.constant 0 : i32
    return %c0_i32, %c0_i32_0 : i32, i32
  }
  func.func @transform_4(%arg0: i32) -> (i32, i32) {
    %c0_i32 = arith.constant 0 : i32
    %c0_i32_0 = arith.constant 0 : i32
    %c0_i32_1 = arith.constant 0 : i32
    return %c0_i32, %c0_i32_0 : i32, i32
  }
  func.func @transform_5(%arg0: i32) -> (i32, i32) {
    %c0_i32 = arith.constant 0 : i32
    %c0_i32_0 = arith.constant 0 : i32
    %c0_i32_1 = arith.constant 0 : i32
    return %c0_i32, %c0_i32_0 : i32, i32
  }
  func.func @transform_6(%arg0: i32) -> (i32, i32) {
    %c0_i32 = arith.constant 0 : i32
    %c0_i32_0 = arith.constant 0 : i32
    %c0_i32_1 = arith.constant 0 : i32
    return %c0_i32, %c0_i32_0 : i32, i32
  }
  func.func @transform_7(%arg0: i32) -> (i32, i32) {
    %c0_i32 = arith.constant 0 : i32
    %c0_i32_0 = arith.constant 0 : i32
    %c0_i32_1 = arith.constant 0 : i32
    return %c0_i32, %c0_i32_0 : i32, i32
  }
  func.func @transform_8(%arg0: i32) -> (i32, i32) {
    %c0_i32 = arith.constant 0 : i32
    %c0_i32_0 = arith.constant 0 : i32
    %c0_i32_1 = arith.constant 0 : i32
    return %c0_i32, %c0_i32_0 : i32, i32
  }
  func.func @transform_9(%arg0: i32) -> (i32, i32) {
    %c0_i32 = arith.constant 0 : i32
    %c0_i32_0 = arith.constant 0 : i32
    %c0_i32_1 = arith.constant 0 : i32
    return %c0_i32, %c0_i32_0 : i32, i32
  }
  func.func @transform_10(%arg0: i32) -> (i32, i32) {
    %c0_i32 = arith.constant 0 : i32
    %c0_i32_0 = arith.constant 0 : i32
    return %arg0, %c0_i32 : i32, i32
  }
  func.func @transform_11(%arg0: i32) -> (i32, i32) {
    %c0_i32 = arith.constant 0 : i32
    %c0_i32_0 = arith.constant 0 : i32
    return %arg0, %c0_i32 : i32, i32
  }
}

</mosaic_0001>

<llo_original>
// kernel: tpu_custom_call.1
$region0: #{tpu_custom_call.1}
  #allocation0 [shape = 'u32[]', space=smem, size = 0x4, offset = 0x4, fixed_abs, tag = 'smem constant byte address 0x4 - core index']
  #allocation1 [shape = 'u32[72,128]{1,0:T(1,128)}', space=vmem, size = 0x9000, scoped, tag = 'internal scratch']
  %s0 = inlined_call_operand.hbm [shape: bf16[8,128], index: 0, kind: input, shape index: {}]
  %s1 = inlined_call_operand.hbm [shape: f32[8,128], index: 1, kind: input, shape index: {}]
  %s2 = inlined_call_operand.hbm [shape: bf16[128,128], index: 2, kind: input, shape index: {}]
  %s3 = inlined_call_operand.vmem [shape: f32[1,128], index: 3, kind: input, shape index: {}]
  %s4 = inlined_call_operand.hbm [shape: bf16[128,256], index: 4, kind: input, shape index: {}]
  %s5 = inlined_call_operand.vmem [shape: f32[1,256], index: 5, kind: input, shape index: {}]
  %s6 = inlined_call_operand.hbm [shape: bf16[128,128], index: 6, kind: input, shape index: {}]
  %s7 = inlined_call_operand.vmem [shape: f32[1,128], index: 7, kind: input, shape index: {}]
  %s8 = inlined_call_operand.hbm [shape: bf16[128,128], index: 8, kind: input, shape index: {}]
  %s9 = inlined_call_operand.vmem [shape: f32[1,128], index: 9, kind: input, shape index: {}]
  %s10 = inlined_call_operand.hbm [shape: bf16[8,128], index: 10, kind: output, shape index: {0}]
  %s11 = inlined_call_operand.hbm [shape: f32[8,256], index: 11, kind: output, shape index: {1}]
  %12 = xla_tuple %s10, %s11
  %s13 = sld [smem:[#allocation0]]
  $region82: #{tpu_custom_call.1} parent=0
    _
  %s15 = ssub.s32 1, %s13
  %s16 = scalar_select 0, %s15, %s13
  $region1: #{tpu_custom_call.1} parent=0
    #allocation2 [shape = 'u8[2048]{0}', space=vmem, size = 0x800, scoped, tag = 'input window, operand 0, single buffered']
    #allocation3 [shape = 's32[1]{0}', space=sflag, size = 0x4, scoped, tag = 'scoped memory for tpu_custom_call.1']
    #allocation4 [shape = 's32[1]{0}', space=sflag, size = 0x4, scoped, tag = 'scoped memory for tpu_custom_call.1']
    #allocation5 [shape = 'u8[4096]{0}', space=vmem, size = 0x1000, scoped, tag = 'input window, operand 1, single buffered']
    #allocation6 [shape = 's32[1]{0}', space=sflag, size = 0x4, scoped, tag = 'scoped memory for tpu_custom_call.1']
    #allocation7 [shape = 'u8[32768]{0}', space=vmem, size = 0x8000, scoped, tag = 'input window, operand 2, single buffered']
    #allocation8 [shape = 'u8[65536]{0}', space=vmem, size = 0x10000, scoped, tag = 'input window, operand 4, single buffered']
    #allocation9 [shape = 's32[1]{0}', space=sflag, size = 0x4, scoped, tag = 'scoped memory for tpu_custom_call.1']
    #allocation10 [shape = 'u8[32768]{0}', space=vmem, size = 0x8000, scoped, tag = 'input window, operand 6, single buffered']
    #allocation11 [shape = 'u8[32768]{0}', space=vmem, size = 0x8000, scoped, tag = 'input window, operand 8, single buffered']
    #allocation12 [shape = 's32[1]{0}', space=sflag, size = 0x4, scoped, tag = 'scoped memory for tpu_custom_call.1']
    #allocation13 [shape = 'u8[2048]{0}', space=vmem, size = 0x800, scoped, tag = 'output window, operand 0, single buffered']
    #allocation14 [shape = 'u8[8192]{0}', space=vmem, size = 0x2000, scoped, tag = 'output window, operand 1, single buffered']
    #allocation15 [shape = 's32[1]{0}', space=sflag, size = 0x4, scoped, tag = 'scoped memory for tpu_custom_call.1']
    %17 = vsyncpa [#allocation3], 0
    %18 = vsyncpa [#allocation6], 0
    %19 = vsyncpa [#allocation9], 0
    %20 = vsyncpa [#allocation12], 0
    %21 = vsyncpa [#allocation4], 0
    %22 = vsyncpa [#allocation15], 0
    // Predicated region
    $region2: #{tpu_custom_call.1} parent=1 // pred_check
      _
    $region3: #{tpu_custom_call.1} parent=1 // pred_check_branch
      %24 = sbr.rel (0) target = $region5
    $region4: #{tpu_custom_call.1} parent=1 // pred_region
      %26 = vsyncadd [#allocation3], 0
      %s28 = sshll.u32 %s0, 4
      %s29 = int_to_ptr.hbm [resolvable:$true] %s28
      %s30 = sshll.u32 [#allocation2], 4
      %s31 = int_to_ptr.vmem [resolvable:$true] %s30
      %33 = dma.hbm_to_vmem [thread:$0]  %s29, 64, %s31, [#allocation3]
    $region5: #{tpu_custom_call.1} parent=1 // pred_fallthru
      _
    // Predicated region
    $region6: #{tpu_custom_call.1} parent=1 // pred_check
      _
    $region7: #{tpu_custom_call.1} parent=1 // pred_check_branch
      %35 = sbr.rel (0) target = $region9
    $region8: #{tpu_custom_call.1} parent=1 // pred_region
      %37 = vsyncadd [#allocation6], 0
      %s39 = sshll.u32 %s1, 4
      %s40 = int_to_ptr.hbm [resolvable:$true] %s39
      %s41 = sshll.u32 [#allocation5], 4
      %s42 = int_to_ptr.vmem [resolvable:$true] %s41
      %44 = dma.hbm_to_vmem [thread:$0]  %s40, 128, %s42, [#allocation6]
    $region9: #{tpu_custom_call.1} parent=1 // pred_fallthru
      _
    // Predicated region
    $region10: #{tpu_custom_call.1} parent=1 // pred_check
      _
    $region11: #{tpu_custom_call.1} parent=1 // pred_check_branch
      %46 = sbr.rel (0) target = $region13
    $region12: #{tpu_custom_call.1} parent=1 // pred_region
      %48 = vsyncadd [#allocation6], 0
      %s49 = sshll.u32 %s2, 4
      %s50 = int_to_ptr.hbm [resolvable:$true] %s49
      %s51 = sshll.u32 [#allocation7], 4
      %s52 = int_to_ptr.vmem [resolvable:$true] %s51
      %57 = dma.hbm_to_vmem [thread:$0]  %s50, 1024, %s52, [#allocation6], 64, 64, 4
    $region13: #{tpu_custom_call.1} parent=1 // pred_fallthru
      _
    // Predicated region
    $region14: #{tpu_custom_call.1} parent=1 // pred_check
      _
    $region15: #{tpu_custom_call.1} parent=1 // pred_check_branch
      %59 = sbr.rel (0) target = $region17
    $region16: #{tpu_custom_call.1} parent=1 // pred_region
      _
    $region17: #{tpu_custom_call.1} parent=1 // pred_fallthru
      _
    // Predicated region
    $region18: #{tpu_custom_call.1} parent=1 // pred_check
      _
    $region19: #{tpu_custom_call.1} parent=1 // pred_check_branch
      %61 = sbr.rel (0) target = $region21
    $region20: #{tpu_custom_call.1} parent=1 // pred_region
      %63 = vsyncadd [#allocation9], 0
      %s64 = sshll.u32 %s4, 4
      %s65 = int_to_ptr.hbm [resolvable:$true] %s64
      %s66 = sshll.u32 [#allocation8], 4
      %s67 = int_to_ptr.vmem [resolvable:$true] %s66
      %72 = dma.hbm_to_vmem [thread:$0]  %s65, 2048, %s67, [#allocation9], 128, 128, 8
    $region21: #{tpu_custom_call.1} parent=1 // pred_fallthru
      _
    // Predicated region
    $region22: #{tpu_custom_call.1} parent=1 // pred_check
      _
    $region23: #{tpu_custom_call.1} parent=1 // pred_check_branch
      %74 = sbr.rel (0) target = $region25
    $region24: #{tpu_custom_call.1} parent=1 // pred_region
      _
    $region25: #{tpu_custom_call.1} parent=1 // pred_fallthru
      _
    // Predicated region
    $region26: #{tpu_custom_call.1} parent=1 // pred_check
      _
    $region27: #{tpu_custom_call.1} parent=1 // pred_check_branch
      %76 = sbr.rel (0) target = $region29
    $region28: #{tpu_custom_call.1} parent=1 // pred_region
      %78 = vsyncadd [#allocation9], 0
      %s79 = sshll.u32 %s6, 4
      %s80 = int_to_ptr.hbm [resolvable:$true] %s79
      %s81 = sshll.u32 [#allocation10], 4
      %s82 = int_to_ptr.vmem [resolvable:$true] %s81
      %87 = dma.hbm_to_vmem [thread:$0]  %s80, 1024, %s82, [#allocation9], 64, 64, 4
    $region29: #{tpu_custom_call.1} parent=1 // pred_fallthru
      _
    // Predicated region
    $region30: #{tpu_custom_call.1} parent=1 // pred_check
      _
    $region31: #{tpu_custom_call.1} parent=1 // pred_check_branch
      %89 = sbr.rel (0) target = $region33
    $region32: #{tpu_custom_call.1} parent=1 // pred_region
      _
    $region33: #{tpu_custom_call.1} parent=1 // pred_fallthru
      _
    // Predicated region
    $region34: #{tpu_custom_call.1} parent=1 // pred_check
      _
    $region35: #{tpu_custom_call.1} parent=1 // pred_check_branch
      %91 = sbr.rel (0) target = $region37
    $region36: #{tpu_custom_call.1} parent=1 // pred_region
      %93 = vsyncadd [#allocation12], 0
      %s94 = sshll.u32 %s8, 4
      %s95 = int_to_ptr.hbm [resolvable:$true] %s94
      %s96 = sshll.u32 [#allocation11], 4
      %s97 = int_to_ptr.vmem [resolvable:$true] %s96
      %102 = dma.hbm_to_vmem [thread:$0]  %s95, 1024, %s97, [#allocation12], 64, 64, 4
    $region37: #{tpu_custom_call.1} parent=1 // pred_fallthru
      _
    // Predicated region
    $region38: #{tpu_custom_call.1} parent=1 // pred_check
      _
    $region39: #{tpu_custom_call.1} parent=1 // pred_check_branch
      %104 = sbr.rel (0) target = $region41
    $region40: #{tpu_custom_call.1} parent=1 // pred_region
      _
    $region41: #{tpu_custom_call.1} parent=1 // pred_fallthru
      _
    // Predicated region
    $region42: #{tpu_custom_call.1} parent=1 // pred_check
      _
    $region43: #{tpu_custom_call.1} parent=1 // pred_check_branch
      %106 = sbr.rel (0) target = $region45
    $region44: #{tpu_custom_call.1} parent=1 // pred_region
      %108 = dma.done [#allocation3], 64
    $region45: #{tpu_custom_call.1} parent=1 // pred_fallthru
      _
    // Predicated region
    $region46: #{tpu_custom_call.1} parent=1 // pred_check
      _
    $region47: #{tpu_custom_call.1} parent=1 // pred_check_branch
      %110 = sbr.rel (0) target = $region49
    $region48: #{tpu_custom_call.1} parent=1 // pred_region
      %112 = dma.done [#allocation6], 128
    $region49: #{tpu_custom_call.1} parent=1 // pred_fallthru
      _
    // Predicated region
    $region50: #{tpu_custom_call.1} parent=1 // pred_check
      _
    $region51: #{tpu_custom_call.1} parent=1 // pred_check_branch
      %114 = sbr.rel (0) target = $region53
    $region52: #{tpu_custom_call.1} parent=1 // pred_region
      %116 = dma.done [#allocation6], 1024
    $region53: #{tpu_custom_call.1} parent=1 // pred_fallthru
      _
    // Predicated region
    $region54: #{tpu_custom_call.1} parent=1 // pred_check
      _
    $region55: #{tpu_custom_call.1} parent=1 // pred_check_branch
      %118 = sbr.rel (0) target = $region57
    $region56: #{tpu_custom_call.1} parent=1 // pred_region
      %120 = dma.done [#allocation9], 2048
    $region57: #{tpu_custom_call.1} parent=1 // pred_fallthru
      _
    // Predicated region
    $region58: #{tpu_custom_call.1} parent=1 // pred_check
      _
    $region59: #{tpu_custom_call.1} parent=1 // pred_check_branch
      %122 = sbr.rel (0) target = $region61
    $region60: #{tpu_custom_call.1} parent=1 // pred_region
      %124 = dma.done [#allocation9], 1024
    $region61: #{tpu_custom_call.1} parent=1 // pred_fallthru
      _
    // Predicated region
    $region62: #{tpu_custom_call.1} parent=1 // pred_check
      _
    $region63: #{tpu_custom_call.1} parent=1 // pred_check_branch
      %126 = sbr.rel (0) target = $region65
    $region64: #{tpu_custom_call.1} parent=1 // pred_region
      %128 = dma.done [#allocation12], 1024
    $region65: #{tpu_custom_call.1} parent=1 // pred_fallthru
      _
    %v129 = vld [vmem:[#allocation2] sm:$0xf]
    %v130 = vld [vmem:[#allocation7] sm:$0xf]
    %v131 = vld [vmem:[#allocation7 + $0x4] sm:$0xf]
    %v132 = vld [vmem:[#allocation7 + $0x8] sm:$0xf]
    %v133 = vld [vmem:[#allocation7 + $0xc] sm:$0xf]
    %v134 = vld [vmem:[#allocation7 + $0x10] sm:$0xf]
    %v135 = vld [vmem:[#allocation7 + $0x14] sm:$0xf]
    %v136 = vld [vmem:[#allocation7 + $0x18] sm:$0xf]
    %v137 = vld [vmem:[#allocation7 + $0x1c] sm:$0xf]
    %v138 = vld [vmem:[#allocation7 + $0x20] sm:$0xf]
    %v139 = vld [vmem:[#allocation7 + $0x24] sm:$0xf]
    %v140 = vld [vmem:[#allocation7 + $0x28] sm:$0xf]
    %v141 = vld [vmem:[#allocation7 + $0x2c] sm:$0xf]
    %v142 = vld [vmem:[#allocation7 + $0x30] sm:$0xf]
    %v143 = vld [vmem:[#allocation7 + $0x34] sm:$0xf]
    %v144 = vld [vmem:[#allocation7 + $0x38] sm:$0xf]
    %v145 = vld [vmem:[#allocation7 + $0x3c] sm:$0xf]
    %v146 = vld [vmem:[%s3] sm:$0x1]
    %v148 = vperm.slane %v146, 0
    %v166 = vunpack.c.l.b16 %v130
    %v167 = vunpack.c.l.b16 %v131
    %v168 = vunpack.c.l.b16 %v132
    %v169 = vunpack.c.l.b16 %v133
    %v170 = vunpack.c.l.b16 %v134
    %v171 = vunpack.c.l.b16 %v135
    %v172 = vunpack.c.l.b16 %v136
    %v173 = vunpack.c.l.b16 %v137
    %v174 = vunpack.c.l.b16 %v138
    %v175 = vunpack.c.l.b16 %v139
    %v176 = vunpack.c.l.b16 %v140
    %v177 = vunpack.c.l.b16 %v141
    %v178 = vunpack.c.l.b16 %v142
    %v179 = vunpack.c.l.b16 %v143
    %v180 = vunpack.c.l.b16 %v144
    %v181 = vunpack.c.l.b16 %v145
    %v182 = vpack.c.b16 %v167, %v166
    %v183 = vpack.c.b16 %v169, %v168
    %v184 = vpack.c.b16 %v171, %v170
    %v185 = vpack.c.b16 %v173, %v172
    %v186 = vpack.c.b16 %v175, %v174
    %v187 = vpack.c.b16 %v177, %v176
    %v188 = vpack.c.b16 %v179, %v178
    %v189 = vpack.c.b16 %v181, %v180
    %198 = vmatpush.bf16.msra.mxu0 %v189
    %199 = vmatpush.bf16.msra.mxu0 %v188
    %200 = vmatpush.bf16.msra.mxu0 %v187
    %201 = vmatpush.bf16.msra.mxu0 %v186
    %202 = vmatpush.bf16.msra.mxu0 %v185
    %203 = vmatpush.bf16.msra.mxu0 %v184
    %204 = vmatpush.bf16.msra.mxu0 %v183
    %205 = vmatpush.bf16.msra.mxu0 %v182
    %206 = vmatmul.bf16.gmra.mxu0 %v129
    %v207 = vpop.f32.mrf.mxu0
    %v208 = vadd.f32 %v148, %v207
    %v209 = vpop.f32.mrf.mxu0
    %210 = vdwg.mxu0
    %v211 = vmax.f32 %v208, 0.0
    %v212 = vpack.c.bf16 %v211, %v211
    %v213 = vld [vmem:[#allocation8] sm:$0xff]
    %v214 = vld [vmem:[#allocation8 + $0x8] sm:$0xff]
    %v215 = vld [vmem:[#allocation8 + $0x10] sm:$0xff]
    %v216 = vld [vmem:[#allocation8 + $0x18] sm:$0xff]
    %v217 = vld [vmem:[#allocation8 + $0x20] sm:$0xff]
    %v218 = vld [vmem:[#allocation8 + $0x28] sm:$0xff]
    %v219 = vld [vmem:[#allocation8 + $0x30] sm:$0xff]
    %v220 = vld [vmem:[#allocation8 + $0x38] sm:$0xff]
    %v221 = vld [vmem:[#allocation8 + $0x40] sm:$0xff]
    %v222 = vld [vmem:[#allocation8 + $0x48] sm:$0xff]
    %v223 = vld [vmem:[#allocation8 + $0x50] sm:$0xff]
    %v224 = vld [vmem:[#allocation8 + $0x58] sm:$0xff]
    %v225 = vld [vmem:[#allocation8 + $0x60] sm:$0xff]
    %v226 = vld [vmem:[#allocation8 + $0x68] sm:$0xff]
    %v227 = vld [vmem:[#allocation8 + $0x70] sm:$0xff]
    %v228 = vld [vmem:[#allocation8 + $0x78] sm:$0xff]
    %v229 = vld [vmem:[%s5] sm:$0x3]
    %v231 = vperm.slane %v229, 0
    %v232 = vperm.slane %v229, 1
    %v251 = vunpack.c.l.b16 %v213
    %v252 = vunpack.c.h.b16 %v213
    %v253 = vunpack.c.l.b16 %v214
    %v254 = vunpack.c.h.b16 %v214
    %v255 = vunpack.c.l.b16 %v215
    %v256 = vunpack.c.h.b16 %v215
    %v257 = vunpack.c.l.b16 %v216
    %v258 = vunpack.c.h.b16 %v216
    %v259 = vunpack.c.l.b16 %v217
    %v260 = vunpack.c.h.b16 %v217
    %v261 = vunpack.c.l.b16 %v218
    %v262 = vunpack.c.h.b16 %v218
    %v263 = vunpack.c.l.b16 %v219
    %v264 = vunpack.c.h.b16 %v219
    %v265 = vunpack.c.l.b16 %v220
    %v266 = vunpack.c.h.b16 %v220
    %v267 = vunpack.c.l.b16 %v221
    %v268 = vunpack.c.h.b16 %v221
    %v269 = vunpack.c.l.b16 %v222
    %v270 = vunpack.c.h.b16 %v222
    %v271 = vunpack.c.l.b16 %v223
    %v272 = vunpack.c.h.b16 %v223
    %v273 = vunpack.c.l.b16 %v224
    %v274 = vunpack.c.h.b16 %v224
    %v275 = vunpack.c.l.b16 %v225
    %v276 = vunpack.c.h.b16 %v225
    %v277 = vunpack.c.l.b16 %v226
    %v278 = vunpack.c.h.b16 %v226
    %v279 = vunpack.c.l.b16 %v227
    %v280 = vunpack.c.h.b16 %v227
    %v281 = vunpack.c.l.b16 %v228
    %v282 = vunpack.c.h.b16 %v228
    %v283 = vpack.c.b16 %v253, %v251
    %v284 = vpack.c.b16 %v254, %v252
    %v285 = vpack.c.b16 %v257, %v255
    %v286 = vpack.c.b16 %v258, %v256
    %v287 = vpack.c.b16 %v261, %v259
    %v288 = vpack.c.b16 %v262, %v260
    %v289 = vpack.c.b16 %v265, %v263
    %v290 = vpack.c.b16 %v266, %v264
    %v291 = vpack.c.b16 %v269, %v267
    %v292 = vpack.c.b16 %v270, %v268
    %v293 = vpack.c.b16 %v273, %v271
    %v294 = vpack.c.b16 %v274, %v272
    %v295 = vpack.c.b16 %v277, %v275
    %v296 = vpack.c.b16 %v278, %v276
    %v297 = vpack.c.b16 %v281, %v279
    %v298 = vpack.c.b16 %v282, %v280
    %315 = vmatpush.bf16.msra.mxu0 %v297
    %316 = vmatpush.bf16.msra.mxu0 %v295
    %317 = vmatpush.bf16.msra.mxu0 %v293
    %318 = vmatpush.bf16.msra.mxu0 %v291
    %319 = vmatpush.bf16.msra.mxu0 %v289
    %320 = vmatpush.bf16.msra.mxu0 %v287
    %321 = vmatpush.bf16.msra.mxu0 %v285
    %322 = vmatpush.bf16.msra.mxu0 %v283
    %323 = vmatmul.bf16.gmra.mxu0 %v212
    %v324 = vpop.f32.mrf.mxu0
    %v325 = vadd.f32 %v231, %v324
    %v326 = vpop.f32.mrf.mxu0
    %327 = vdwg.mxu0
    %328 = vmatpush.bf16.msra.mxu0 %v298
    %329 = vmatpush.bf16.msra.mxu0 %v296
    %330 = vmatpush.bf16.msra.mxu0 %v294
    %331 = vmatpush.bf16.msra.mxu0 %v292
    %332 = vmatpush.bf16.msra.mxu0 %v290
    %333 = vmatpush.bf16.msra.mxu0 %v288
    %334 = vmatpush.bf16.msra.mxu0 %v286
    %335 = vmatpush.bf16.msra.mxu0 %v284
    %336 = vmatmul.bf16.gmra.mxu0 %v212
    %v337 = vpop.f32.mrf.mxu0
    %v338 = vadd.f32 %v232, %v337
    %v339 = vpop.f32.mrf.mxu0
    %340 = vdwg.mxu0
    %v341 = vld [vmem:[#allocation5] sm:$0xff]
    %v342 = vmul.f32 %v338, 0.5
    %v343 = vmul.f32 %v342, 1.442695
    %v344 = vpow.pop %v343
    %v345 = vmul.f32 %v341, %v344
    %v346 = vadd.f32 %v325, %v345
    %v347 = vpack.c.bf16 %v346, %v346
    %v348 = vld [vmem:[#allocation10] sm:$0xf]
    %v349 = vld [vmem:[#allocation10 + $0x4] sm:$0xf]
    %v350 = vld [vmem:[#allocation10 + $0x8] sm:$0xf]
    %v351 = vld [vmem:[#allocation10 + $0xc] sm:$0xf]
    %v352 = vld [vmem:[#allocation10 + $0x10] sm:$0xf]
    %v353 = vld [vmem:[#allocation10 + $0x14] sm:$0xf]
    %v354 = vld [vmem:[#allocation10 + $0x18] sm:$0xf]
    %v355 = vld [vmem:[#allocation10 + $0x1c] sm:$0xf]
    %v356 = vld [vmem:[#allocation10 + $0x20] sm:$0xf]
    %v357 = vld [vmem:[#allocation10 + $0x24] sm:$0xf]
    %v358 = vld [vmem:[#allocation10 + $0x28] sm:$0xf]
    %v359 = vld [vmem:[#allocation10 + $0x2c] sm:$0xf]
    %v360 = vld [vmem:[#allocation10 + $0x30] sm:$0xf]
    %v361 = vld [vmem:[#allocation10 + $0x34] sm:$0xf]
    %v362 = vld [vmem:[#allocation10 + $0x38] sm:$0xf]
    %v363 = vld [vmem:[#allocation10 + $0x3c] sm:$0xf]
    %v364 = vld [vmem:[%s7] sm:$0x1]
    %v366 = vperm.slane %v364, 0
    %v384 = vunpack.c.l.b16 %v348
    %v385 = vunpack.c.l.b16 %v349
    %v386 = vunpack.c.l.b16 %v350
    %v387 = vunpack.c.l.b16 %v351
    %v388 = vunpack.c.l.b16 %v352
    %v389 = vunpack.c.l.b16 %v353
    %v390 = vunpack.c.l.b16 %v354
    %v391 = vunpack.c.l.b16 %v355
    %v392 = vunpack.c.l.b16 %v356
    %v393 = vunpack.c.l.b16 %v357
    %v394 = vunpack.c.l.b16 %v358
    %v395 = vunpack.c.l.b16 %v359
    %v396 = vunpack.c.l.b16 %v360
    %v397 = vunpack.c.l.b16 %v361
    %v398 = vunpack.c.l.b16 %v362
    %v399 = vunpack.c.l.b16 %v363
    %v400 = vpack.c.b16 %v385, %v384
    %v401 = vpack.c.b16 %v387, %v386
    %v402 = vpack.c.b16 %v389, %v388
    %v403 = vpack.c.b16 %v391, %v390
    %v404 = vpack.c.b16 %v393, %v392
    %v405 = vpack.c.b16 %v395, %v394
    %v406 = vpack.c.b16 %v397, %v396
    %v407 = vpack.c.b16 %v399, %v398
    %416 = vmatpush.bf16.msra.mxu0 %v407
    %417 = vmatpush.bf16.msra.mxu0 %v406
    %418 = vmatpush.bf16.msra.mxu0 %v405
    %419 = vmatpush.bf16.msra.mxu0 %v404
    %420 = vmatpush.bf16.msra.mxu0 %v403
    %421 = vmatpush.bf16.msra.mxu0 %v402
    %422 = vmatpush.bf16.msra.mxu0 %v401
    %423 = vmatpush.bf16.msra.mxu0 %v400
    %424 = vmatmul.bf16.gmra.mxu0 %v347
    %v425 = vpop.f32.mrf.mxu0
    %v426 = vadd.f32 %v366, %v425
    %v427 = vpop.f32.mrf.mxu0
    %428 = vdwg.mxu0
    %v429 = vmax.f32 %v426, 0.0
    %v430 = vpack.c.bf16 %v429, %v429
    %v431 = vld [vmem:[#allocation11] sm:$0xf]
    %v432 = vld [vmem:[#allocation11 + $0x4] sm:$0xf]
    %v433 = vld [vmem:[#allocation11 + $0x8] sm:$0xf]
    %v434 = vld [vmem:[#allocation11 + $0xc] sm:$0xf]
    %v435 = vld [vmem:[#allocation11 + $0x10] sm:$0xf]
    %v436 = vld [vmem:[#allocation11 + $0x14] sm:$0xf]
    %v437 = vld [vmem:[#allocation11 + $0x18] sm:$0xf]
    %v438 = vld [vmem:[#allocation11 + $0x1c] sm:$0xf]
    %v439 = vld [vmem:[#allocation11 + $0x20] sm:$0xf]
    %v440 = vld [vmem:[#allocation11 + $0x24] sm:$0xf]
    %v441 = vld [vmem:[#allocation11 + $0x28] sm:$0xf]
    %v442 = vld [vmem:[#allocation11 + $0x2c] sm:$0xf]
    %v443 = vld [vmem:[#allocation11 + $0x30] sm:$0xf]
    %v444 = vld [vmem:[#allocation11 + $0x34] sm:$0xf]
    %v445 = vld [vmem:[#allocation11 + $0x38] sm:$0xf]
    %v446 = vld [vmem:[#allocation11 + $0x3c] sm:$0xf]
    %v447 = vld [vmem:[%s9] sm:$0x1]
    %v449 = vperm.slane %v447, 0
    %v467 = vunpack.c.l.b16 %v431
    %v468 = vunpack.c.l.b16 %v432
    %v469 = vunpack.c.l.b16 %v433
    %v470 = vunpack.c.l.b16 %v434
    %v471 = vunpack.c.l.b16 %v435
    %v472 = vunpack.c.l.b16 %v436
    %v473 = vunpack.c.l.b16 %v437
    %v474 = vunpack.c.l.b16 %v438
    %v475 = vunpack.c.l.b16 %v439
    %v476 = vunpack.c.l.b16 %v440
    %v477 = vunpack.c.l.b16 %v441
    %v478 = vunpack.c.l.b16 %v442
    %v479 = vunpack.c.l.b16 %v443
    %v480 = vunpack.c.l.b16 %v444
    %v481 = vunpack.c.l.b16 %v445
    %v482 = vunpack.c.l.b16 %v446
    %v483 = vpack.c.b16 %v468, %v467
    %v484 = vpack.c.b16 %v470, %v469
    %v485 = vpack.c.b16 %v472, %v471
    %v486 = vpack.c.b16 %v474, %v473
    %v487 = vpack.c.b16 %v476, %v475
    %v488 = vpack.c.b16 %v478, %v477
    %v489 = vpack.c.b16 %v480, %v479
    %v490 = vpack.c.b16 %v482, %v481
    %499 = vmatpush.bf16.msra.mxu0 %v490
    %500 = vmatpush.bf16.msra.mxu0 %v489
    %501 = vmatpush.bf16.msra.mxu0 %v488
    %502 = vmatpush.bf16.msra.mxu0 %v487
    %503 = vmatpush.bf16.msra.mxu0 %v486
    %504 = vmatpush.bf16.msra.mxu0 %v485
    %505 = vmatpush.bf16.msra.mxu0 %v484
    %506 = vmatpush.bf16.msra.mxu0 %v483
    %507 = vmatmul.bf16.gmra.mxu0 %v430
    %v508 = vpop.f32.mrf.mxu0
    %v509 = vadd.f32 %v449, %v508
    %v510 = vpop.f32.mrf.mxu0
    %511 = vdwg.mxu0
    %v512 = vmul.f32 %v509, 0.5
    %v513 = vtanh.pop %v512
    %v514 = vadd.f32 %v513, 1.0
    %v515 = vmul.f32 %v514, 0.5
    %v516 = vpack.c.bf16 %v515, %v515
    %517 = vst [vmem:[#allocation13] sm:$0xf] %v516
    %518 = vst [vmem:[#allocation14] sm:$0xff] %v325
    %519 = vst [vmem:[#allocation14 + $0x8] sm:$0xff] %v338
    // Predicated region
    $region66: #{tpu_custom_call.1} parent=1 // pred_check
      _
    $region67: #{tpu_custom_call.1} parent=1 // pred_check_branch
      %521 = sbr.rel (0) target = $region69
    $region68: #{tpu_custom_call.1} parent=1 // pred_region
      %523 = vsyncadd [#allocation4], 0
      %s525 = sshll.u32 [#allocation13], 4
      %s526 = int_to_ptr.vmem [resolvable:$true] %s525
      %s527 = sshll.u32 %s10, 4
      %s528 = int_to_ptr.hbm [resolvable:$true] %s527
      %530 = dma.vmem_to_hbm [thread:$0]  %s526, 64, %s528, [#allocation4]
    $region69: #{tpu_custom_call.1} parent=1 // pred_fallthru
      _
    // Predicated region
    $region70: #{tpu_custom_call.1} parent=1 // pred_check
      _
    $region71: #{tpu_custom_call.1} parent=1 // pred_check_branch
      %532 = sbr.rel (0) target = $region73
    $region72: #{tpu_custom_call.1} parent=1 // pred_region
      %534 = vsyncadd [#allocation15], 0
      %s536 = sshll.u32 [#allocation14], 4
      %s537 = int_to_ptr.vmem [resolvable:$true] %s536
      %s538 = sshll.u32 %s11, 4
      %s539 = int_to_ptr.hbm [resolvable:$true] %s538
      %541 = dma.vmem_to_hbm [thread:$0]  %s537, 256, %s539, [#allocation15]
    $region73: #{tpu_custom_call.1} parent=1 // pred_fallthru
      _
    // Predicated region
    $region74: #{tpu_custom_call.1} parent=1 // pred_check
      _
    $region75: #{tpu_custom_call.1} parent=1 // pred_check_branch
      %543 = sbr.rel (0) target = $region77
    $region76: #{tpu_custom_call.1} parent=1 // pred_region
      %545 = dma.done [#allocation4], 64
    $region77: #{tpu_custom_call.1} parent=1 // pred_fallthru
      _
    // Predicated region
    $region78: #{tpu_custom_call.1} parent=1 // pred_check
      _
    $region79: #{tpu_custom_call.1} parent=1 // pred_check_branch
      %547 = sbr.rel (0) target = $region81
    $region80: #{tpu_custom_call.1} parent=1 // pred_region
      %549 = dma.done [#allocation15], 256
    $region81: #{tpu_custom_call.1} parent=1 // pred_fallthru
      _
    %550 = vsyncpa [#allocation3], 1
    %551 = vsyncpa [#allocation6], 1
    %552 = vsyncpa [#allocation9], 1
    %553 = vsyncpa [#allocation12], 1
    %554 = vsyncpa [#allocation4], 1
    %555 = vsyncpa [#allocation15], 1

</llo_original>
